<compile_context>
chip_gen: v6e
topology: v6e:2x2x1
jax: 0.10.0
libtpu: 0.0.40
codegen_flags: <defaults>
</compile_context>

<pallas_src>
import functools

import jax
import jax.numpy as jnp
from jax.experimental import pallas as pl
from jax.experimental.pallas import tpu as pltpu


def _coin_mrf_kernel(y_ref, out_ref, *, block_rows, lanes, chunk_rows):
    b = pl.program_id(1)                      # reduction axis over blocks of Y

    @pl.when(b == 0)
    def _():
        out_ref[...] = jnp.zeros_like(out_ref)

    nchunks = block_rows // chunk_rows

    def body(i, carry):
        s1, s2 = carry
        r0 = pl.multiple_of(i * chunk_rows, chunk_rows)
        yf = y_ref[pl.ds(r0, chunk_rows), :].astype(jnp.float32)
        # Fold sublanes into one (8, lanes) vreg per statistic (pure VPU adds).
        s1 = s1 + jnp.sum(yf.reshape(chunk_rows // 8, 8, lanes), axis=0)
        s2 = s2 + jnp.sum((yf * yf).reshape(chunk_rows // 8, 8, lanes), axis=0)
        return s1, s2

    zero = jnp.zeros((8, lanes), jnp.float32)
    sum_y, sum_sq = jax.lax.fori_loop(0, nchunks, body, (zero, zero),
                                      unroll=(nchunks <= 8))

    # Resident lane-dense accumulators in the output ref (same block for all b).
    out_ref[0, 0] += sum_y
    out_ref[0, 1] += sum_sq


def coin_mrf_prepare(Y, *, block_rows=32768, lanes=128, num_parallel=2):
    """One-time padding / int8 cast / 2-D layout.  Reuse across calls."""
    n = int(Y.shape[0])
    assert lanes % 128 == 0
    # Shrink the tile for small inputs so padding stays bounded.
    rows_needed = -(-n // (lanes * num_parallel))
    rows_needed = max(32, ((rows_needed + 31) // 32) * 32)   # int8 tile is (32,128)
    block_rows = max(32, min(block_rows, rows_needed))
    block_rows = (block_rows // 32) * 32
    per_block = num_parallel * block_rows * lanes
    num_blocks = max(1, -(-n // per_block))
    total = num_blocks * per_block
    y_pad = jnp.zeros((total,), jnp.int8).at[:n].set(Y.astype(jnp.int8))
    y2d = y_pad.reshape(num_parallel * num_blocks * block_rows, lanes)
    return dict(y2d=y2d, n=n, block_rows=block_rows, lanes=lanes,
                num_parallel=num_parallel, num_blocks=num_blocks)


def coin_mrf_forward_prepared(prep, theta, psi, model_type="MNAR", *,
                              chunk_rows=None):
    y2d = prep["y2d"]
    n = prep["n"]
    block_rows = prep["block_rows"]
    lanes = prep["lanes"]
    num_parallel = prep["num_parallel"]
    num_blocks = prep["num_blocks"]

    if chunk_rows is None:
        chunk_rows = block_rows if block_rows <= 1024 else 1024
    assert block_rows % chunk_rows == 0 and chunk_rows % 32 == 0

    kernel = functools.partial(_coin_mrf_kernel, block_rows=block_rows,
                               lanes=lanes, chunk_rows=chunk_rows)

    partials = pl.pallas_call(
        kernel,
        out_shape=jax.ShapeDtypeStruct((num_parallel, 2, 8, lanes), jnp.float32),
        grid_spec=pltpu.PrefetchScalarGridSpec(
            num_scalar_prefetch=0,
            grid=(num_parallel, num_blocks),
            in_specs=[
                pl.BlockSpec((block_rows, lanes),
                             lambda p, b: (p * num_blocks + b, 0)),
            ],
            out_specs=pl.BlockSpec((1, 2, 8, lanes),
                                   lambda p, b: (p, 0, 0, 0)),
        ),
        compiler_params=pltpu.CompilerParams(
            # On v7x, switch the first entry to pltpu.CORE_PARALLEL if the
            # profile shows only one TensorCore busy.
            dimension_semantics=("parallel", "arbitrary"),
            vmem_limit_bytes=48 * 1024 * 1024,   # fits v7x's 64 MiB VMEM
        ),
    )(y2d)

    sum_y = jnp.sum(partials[:, 0])   # S1 = n1 - nm   (padding contributes 0)
    sum_sq = jnp.sum(partials[:, 1])  # S2 = n1 + nm   (padding contributes 0)

    theta = jnp.asarray(theta, jnp.float32)
    psi = jnp.asarray(psi, jnp.float32)
    if model_type == "MNAR":
        a, c = theta + psi, jnp.float32(0.0)
    elif model_type == "MCAR":
        a, c = theta, psi
    else:
        a, c = theta, jnp.float32(0.0)
    lp_miss = jnp.logaddexp(jnp.float32(0.0), theta)

    n1 = 0.5 * (sum_sq + sum_y)          # count(y == 1)
    nm = 0.5 * (sum_sq - sum_y)          # count(y == -1)
    n0 = jnp.float32(n) - sum_sq         # count(y == 0) among real elements

    total_logp = (a + c) * n1 + c * n0 + lp_miss * nm
    return -(total_logp / jnp.float32(n))


def coin_mrf_forward(Y, theta, psi, model_type="MNAR", *,
                     block_rows=32768, lanes=128, num_parallel=2,
                     chunk_rows=None):
    prep = coin_mrf_prepare(Y, block_rows=block_rows, lanes=lanes,
                            num_parallel=num_parallel)
    return coin_mrf_forward_prepared(prep, theta, psi, model_type,
                                     chunk_rows=chunk_rows)


def coin_mrf_reference(Y, theta, psi, model_type="MNAR"):
    """Pure-JAX reference mirroring the PyTorch forward exactly."""
    yf = Y.astype(jnp.float32)
    observed = Y != -1
    if model_type == "MNAR":
        logp_obs = theta * yf + psi * yf
    elif model_type == "MCAR":
        logp_obs = theta * yf + psi
    else:
        logp_obs = theta * yf
    logp_miss = jnp.logaddexp(jnp.float32(0.0), jnp.float32(theta))
    log_p = jnp.where(observed, logp_obs, logp_miss)
    return -jnp.mean(log_p)


if __name__ == "__main__":
    key = jax.random.PRNGKey(0)
    # 1-D sequence of coin observations in {-1, 0, 1}; size chosen so the grid
    # has multiple blocks, both parallel slices, and a zero-padded tail.
    N = 12345
    Y = jax.random.randint(key, (N,), minval=-1, maxval=2, dtype=jnp.int32)

    theta = jnp.float32(0.3)
    psi = jnp.float32(-0.2)

    configs = [
        dict(block_rows=32, chunk_rows=32),    # multiple grid blocks + padding
        dict(block_rows=128, chunk_rows=32),   # multiple inner chunks per block
    ]
    for cfg in configs:
        # Prepare once per layout; reused across model types / parameter values
        # (hoists the pad/cast HBM pass out of the steady state).
        prep = coin_mrf_prepare(Y, block_rows=cfg["block_rows"], lanes=128,
                                num_parallel=2)
        for model_type in ("MNAR", "MCAR", "other"):
            out = coin_mrf_forward_prepared(prep, theta, psi, model_type,
                                            chunk_rows=cfg["chunk_rows"])
            out = jax.block_until_ready(out)
            ref = coin_mrf_reference(Y, theta, psi, model_type)
            assert jnp.allclose(out, ref, atol=1e-5, rtol=1e-5), (
                cfg, model_type, float(out), float(ref))

    # Also exercise the default (large-tile, auto-shrunk) configuration.
    out = jax.block_until_ready(coin_mrf_forward(Y, theta, psi, "MNAR"))
    ref = coin_mrf_reference(Y, theta, psi, "MNAR")
    assert jnp.allclose(out, ref, atol=1e-5, rtol=1e-5), (float(out), float(ref))

    print("KERNEL_OK")
</pallas_src>

<mosaic_0001>
module attributes {stable_mosaic.version = 11 : i64} {
  func.func @_coin_mrf_kernel(%arg0: i32, %arg1: i32, %arg2: memref<32x128xi8, #tpu.memory_space<vmem>>, %arg3: memref<1x2x8x128xf32, #tpu.memory_space<vmem>>) attributes {dimension_semantics = [#tpu.dimension_semantics<parallel>, #tpu.dimension_semantics<arbitrary>], iteration_bounds = array<i64: 2, 2>, scalar_prefetch = 0 : i64, scratch_operands = 0 : i64, tpu.core_type = #tpu.core_type<tc>, window_params = [{transform_indices = @transform_0, window_bounds = array<i64: 32, 128>}, {transform_indices = @transform_1, window_bounds = array<i64: 1, 2, 8, 128>}]} {
    %c0_i32 = arith.constant 0 : i32
    %0 = arith.cmpi eq, %arg1, %c0_i32 : i32
    %1 = arith.extui %0 : i1 to i32
    %c0_i32_0 = arith.constant 0 : i32
    %2 = arith.cmpi ne, %1, %c0_i32_0 : i32
    scf.if %2 {
      %cst_19 = arith.constant 0.000000e+00 : f32
      %28 = vector.broadcast %cst_19 : f32 to vector<1x2x8x128xf32>
      %c0_20 = arith.constant 0 : index
      %c0_21 = arith.constant 0 : index
      %c0_22 = arith.constant 0 : index
      %c0_23 = arith.constant 0 : index
      %29 = vector.load %arg3[%c0_20, %c0_21, %c0_22, %c0_23] : memref<1x2x8x128xf32, #tpu.memory_space<vmem>>, vector<1x2x8x128xf32>
      tpu.vector_store %arg3[%c0_20, %c0_21, %c0_22, %c0_23], %28 {strides = array<i32>} : memref<1x2x8x128xf32, #tpu.memory_space<vmem>>, vector<1x2x8x128xf32>,
    } else {
    }
    %cst = arith.constant 0.000000e+00 : f32
    %3 = vector.broadcast %cst : f32 to vector<8x128xf32>
    %c0_i32_1 = arith.constant 0 : i32
    %c32_i32 = arith.constant 32 : i32
    %4 = arith.muli %c0_i32_1, %c32_i32 : i32
    %5 = tpu.assume_multiple %4, 32 : i32
    %6 = arith.index_cast %5 : i32 to index
    %c0 = arith.constant 0 : index
    %7 = vector.load %arg2[%6, %c0] : memref<32x128xi8, #tpu.memory_space<vmem>>, vector<32x128xi8>
    %8 = arith.sitofp %7 : vector<32x128xi8> to vector<32x128xf32>
    %9 = vector.shape_cast %8 : vector<32x128xf32> to vector<4x8x128xf32>
    %cst_2 = arith.constant dense<0.000000e+00> : vector<8x128xf32>
    %10 = vector.multi_reduction <add>, %9, %cst_2 [0] : vector<4x8x128xf32> to vector<8x128xf32>
    %11 = arith.addf %3, %10 : vector<8x128xf32>
    %12 = arith.mulf %8, %8 : vector<32x128xf32>
    %13 = vector.shape_cast %12 : vector<32x128xf32> to vector<4x8x128xf32>
    %cst_3 = arith.constant dense<0.000000e+00> : vector<8x128xf32>
    %14 = vector.multi_reduction <add>, %13, %cst_3 [0] : vector<4x8x128xf32> to vector<8x128xf32>
    %15 = arith.addf %3, %14 : vector<8x128xf32>
    %c1_i32 = arith.constant 1 : i32
    %c0_4 = arith.constant 0 : index
    %c0_5 = arith.constant 0 : index
    %c0_6 = arith.constant 0 : index
    %c0_7 = arith.constant 0 : index
    %16 = vector.load %arg3[%c0_4, %c0_5, %c0_6, %c0_7] : memref<1x2x8x128xf32, #tpu.memory_space<vmem>>, vector<1x1x8x128xf32>
    %17 = vector.shape_cast %16 : vector<1x1x8x128xf32> to vector<8x128xf32>
    %18 = arith.addf %17, %11 : vector<8x128xf32>
    %c0_8 = arith.constant 0 : index
    %c0_9 = arith.constant 0 : index
    %c0_10 = arith.constant 0 : index
    %c0_11 = arith.constant 0 : index
    %19 = vector.load %arg3[%c0_8, %c0_9, %c0_10, %c0_11] : memref<1x2x8x128xf32, #tpu.memory_space<vmem>>, vector<1x1x8x128xf32>
    %20 = vector.shape_cast %19 : vector<1x1x8x128xf32> to vector<8x128xf32>
    %21 = vector.shape_cast %18 : vector<8x128xf32> to vector<1x1x8x128xf32>
    tpu.vector_store %arg3[%c0_8, %c0_9, %c0_10, %c0_11], %21 {strides = array<i32>} : memref<1x2x8x128xf32, #tpu.memory_space<vmem>>, vector<1x1x8x128xf32>,
    %c0_12 = arith.constant 0 : index
    %c1 = arith.constant 1 : index
    %c0_13 = arith.constant 0 : index
    %c0_14 = arith.constant 0 : index
    %22 = vector.load %arg3[%c0_12, %c1, %c0_13, %c0_14] : memref<1x2x8x128xf32, #tpu.memory_space<vmem>>, vector<1x1x8x128xf32>
    %23 = vector.shape_cast %22 : vector<1x1x8x128xf32> to vector<8x128xf32>
    %24 = arith.addf %23, %15 : vector<8x128xf32>
    %c0_15 = arith.constant 0 : index
    %c1_16 = arith.constant 1 : index
    %c0_17 = arith.constant 0 : index
    %c0_18 = arith.constant 0 : index
    %25 = vector.load %arg3[%c0_15, %c1_16, %c0_17, %c0_18] : memref<1x2x8x128xf32, #tpu.memory_space<vmem>>, vector<1x1x8x128xf32>
    %26 = vector.shape_cast %25 : vector<1x1x8x128xf32> to vector<8x128xf32>
    %27 = vector.shape_cast %24 : vector<8x128xf32> to vector<1x1x8x128xf32>
    tpu.vector_store %arg3[%c0_15, %c1_16, %c0_17, %c0_18], %27 {strides = array<i32>} : memref<1x2x8x128xf32, #tpu.memory_space<vmem>>, vector<1x1x8x128xf32>,
    return
  }
  func.func @transform_0(%arg0: i32, %arg1: i32) -> (i32, i32) {
    %c2_i32 = arith.constant 2 : i32
    %0 = arith.muli %arg0, %c2_i32 : i32
    %1 = arith.addi %0, %arg1 : i32
    %c0_i32 = arith.constant 0 : i32
    %c0_i32_0 = arith.constant 0 : i32
    return %1, %c0_i32 : i32, i32
  }
  func.func @transform_1(%arg0: i32, %arg1: i32) -> (i32, i32, i32, i32) {
    %c0_i32 = arith.constant 0 : i32
    %c0_i32_0 = arith.constant 0 : i32
    %c0_i32_1 = arith.constant 0 : i32
    %c0_i32_2 = arith.constant 0 : i32
    return %arg0, %c0_i32, %c0_i32_0, %c0_i32_1 : i32, i32, i32, i32
  }
}

</mosaic_0001>

<llo_original>
// kernel: tpu_custom_call.1
$region0: #{tpu_custom_call.1}
  #allocation0 [shape = 'u32[]', space=smem, size = 0x4, offset = 0x4, fixed_abs, tag = 'smem constant byte address 0x4 - core index']
  #allocation1 [shape = 'u32[144,128]{1,0:T(1,128)}', space=vmem, size = 0x12000, scoped, tag = 'internal scratch']
  %s0 = inlined_call_operand.hbm [shape: s8[128,128], index: 0, kind: input, shape index: {}]
  %s1 = inlined_call_operand.hbm [shape: f32[2,2,8,128], index: 1, kind: output, shape index: {}]
  %s2 = sld [smem:[#allocation0]]
  $region45: #{tpu_custom_call.1} parent=0
    _
  %s4 = ssub.s32 1, %s2
  %s5 = scalar_select 0, %s4, %s2
  $region1: #{tpu_custom_call.1} parent=0
    #allocation2 [shape = 'u8[8192]{0}', space=vmem, size = 0x2000, scoped, tag = 'input window, operand 0']
    #allocation3 [shape = 's32[2]{0}', space=sflag, size = 0x8, scoped, tag = 'scoped memory for tpu_custom_call.1']
    #allocation4 [shape = 's32[2]{0}', space=sflag, size = 0x8, scoped, tag = 'scoped memory for tpu_custom_call.1']
    #allocation5 [shape = 'u8[16384]{0}', space=vmem, size = 0x4000, scoped, tag = 'output window, operand 0']
    %6 = vsyncpa [#allocation3], 0
    %s7 = scalar_lea.sflag [#allocation3], 1
    %8 = vsyncpa %s7, 0
    %9 = vsyncpa [#allocation4], 0
    %s10 = scalar_lea.sflag [#allocation4], 1
    %11 = vsyncpa %s10, 0
    loop: start=0, step=1, limit=6
    $region2: #{tpu_custom_call.1} parent=1 // loop_pre_header
      _
    $region3: #{tpu_custom_call.1} parent=1 // loop_header
      %s13 = sphi 0, %s17
      %p14 = scmp.ge.s32.totalorder %s13, 6
      %s20 = sphi 0, %s32
      %s21 = sphi 0, %s28
      %s22 = sphi 0, %s20
      %s23 = sphi 0, %s21
      %s24 = sphi 0, %s22
      %s25 = sphi 0, %s23
      %s39 = sphi 0, %s41
      %s42 = sphi 0, %s39
      %s43 = sphi 0, %s42
      %s59 = sphi 0, %s43
      %s65 = sphi 0, %s67
      %s68 = sphi 0, %s65
      %s69 = sphi 0, %s68
      %s85 = sphi 0, %s69
    $region4: #{tpu_custom_call.1} parent=1 // loop_header_branch
      %16 = sbr.rel (%p14) target = $region8
    $region5: #{tpu_custom_call.1} parent=1 // loop_body
      %s18 = ssub.s32 %s13, 1
      %s19 = ssub.s32 %s13, 2
      %s26 = sadd.s32 1, %s21
      %p27 = scmp.ge.s32.totalorder %s26, 2
      %s28 = scalar_select %p27, 0, %s26
      %s29 = sadd.s32 1, %s20
      %s30 = scalar_select %p27, %s29, %s20
      %p31 = scmp.ge.s32.totalorder %s30, 2
      %s32 = scalar_select %p31, 0, %s30
      %s33 = smul.u32 %s20, 2
      %s34 = sadd.s32 %s33, %s21
      %s35 = smul.u32 %s32, 2
      %s36 = sadd.s32 %s35, %s28
      %s37 = ssub.s32 %s34, %s36
      %p38 = scmp.eq.s32.totalorder %s37, 0
      %s40 = sadd.s32 %s39, 1
      %s41 = scalar_select %p38, %s39, %s40
      %p44 = pneg %p38
      %p45 = scmp.eq.s32.totalorder %s13, 3
      %p46 = por %p44, %p45
      %p47 = scmp.ne.s32.totalorder %s39, %s42
      %p48 = scmp.eq.s32.totalorder %s13, 0
      %p49 = por %p47, %p48
      %p50 = scmp.ne.s32.totalorder %s39, %s42
      %p51 = scmp.eq.s32.totalorder %s18, 3
      %p52 = por %p50, %p51
      %p53 = scmp.ne.s32.totalorder %s42, %s43
      %p54 = scmp.eq.s32.totalorder %s18, 0
      %p55 = por %p53, %p54
      %p56 = scmp.ne.s32.totalorder %s42, %s43
      %p57 = scmp.eq.s32.totalorder %s19, 3
      %p58 = por %p56, %p57
      %p60 = scmp.ne.s32.totalorder %s43, %s59
      %p61 = scmp.eq.s32.totalorder %s19, 0
      %p62 = por %p60, %p61
      %s63 = ssub.s32 %s20, %s32
      %p64 = scmp.eq.s32.totalorder %s63, 0
      %s66 = sadd.s32 %s65, 1
      %s67 = scalar_select %p64, %s65, %s66
      %p70 = pneg %p64
      %p71 = scmp.eq.s32.totalorder %s13, 3
      %p72 = por %p70, %p71
      %p73 = scmp.ne.s32.totalorder %s65, %s68
      %p74 = scmp.eq.s32.totalorder %s13, 0
      %p75 = por %p73, %p74
      %p76 = scmp.ne.s32.totalorder %s65, %s68
      %p77 = scmp.eq.s32.totalorder %s18, 3
      %p78 = por %p76, %p77
      %p79 = scmp.ne.s32.totalorder %s68, %s69
      %p80 = scmp.eq.s32.totalorder %s18, 0
      %p81 = por %p79, %p80
      %p82 = scmp.ne.s32.totalorder %s68, %s69
      %p83 = scmp.eq.s32.totalorder %s19, 3
      %p84 = por %p82, %p83
      %p86 = scmp.ne.s32.totalorder %s69, %s85
      %p87 = scmp.eq.s32.totalorder %s19, 0
      %p88 = por %p86, %p87
      %p89 = scmp.le.s32.totalorder 1, %s13
      %p90 = scmp.lt.s32.totalorder %s13, 5
      %p91 = pnand %p89, %p90
      %p92 = pneg %p91
      // Predicated region
      $region9: #{tpu_custom_call.1} parent=5 // pred_check
        _
      $region10: #{tpu_custom_call.1} parent=5 // pred_check_branch
        %94 = sbr.rel (%p91) target = $region12
      $region11: #{tpu_custom_call.1} parent=5 // pred_region
        %s95 = ssub.s32 %s13, 1
      $region12: #{tpu_custom_call.1} parent=5 // pred_fallthru
        _
      %p96 = scmp.lt.s32.totalorder %s13, 4
      // Predicated region
      $region13: #{tpu_custom_call.1} parent=5 // pred_check
        %p97 = pneg %p96
      $region14: #{tpu_custom_call.1} parent=5 // pred_check_branch
        %99 = sbr.rel (%p97) target = $region16
      $region15: #{tpu_custom_call.1} parent=5 // pred_region
        // Predicated region
        $region17: #{tpu_custom_call.1} parent=15 // pred_check
          %p100 = pneg %p49
        $region18: #{tpu_custom_call.1} parent=15 // pred_check_branch
          %102 = sbr.rel (%p100) target = $region20
        $region19: #{tpu_custom_call.1} parent=15 // pred_region
          %s103 = sand.u32 %s39, 1
          %s104 = scalar_lea.sflag [#allocation3], %s103
          %s105 = sand.u32 %s39, 1
          %s106 = smul.addr %s105, 8
          %s107 = scalar_lea.vmem [#allocation2], %s106
          %s108 = smul.u32 %s20, 2
          %s109 = sadd.s32 %s108, %s21
          %s111 = ssub.s32 128, 128
          %112 = vsyncadd %s104, %s111
          %s113 = smul.addr %s109, 128
          %s114 = scalar_lea.hbm %s0, %s113
          %s116 = sshll.u32 %s107, 4
          %s117 = int_to_ptr.vmem [resolvable:$true] %s116
          %119 = dma.hbm_to_vmem [thread:$0]  %s114, 128, %s117, %s104
        $region20: #{tpu_custom_call.1} parent=15 // pred_fallthru
          _
      $region16: #{tpu_custom_call.1} parent=5 // pred_fallthru
        _
      %p120 = scmp.le.s32.totalorder 1, %s13
      %p121 = scmp.lt.s32.totalorder %s13, 5
      %p122 = pnand %p120, %p121
      %p123 = pneg %p122
      // Predicated region
      $region21: #{tpu_custom_call.1} parent=5 // pred_check
        _
      $region22: #{tpu_custom_call.1} parent=5 // pred_check_branch
        %125 = sbr.rel (%p122) target = $region24
      $region23: #{tpu_custom_call.1} parent=5 // pred_region
        %s126 = ssub.s32 %s13, 1
        %s127 = sand.u32 %s42, 1
        %s128 = scalar_lea.sflag [#allocation3], %s127
        %s129 = sand.u32 %s42, 1
        %s130 = smul.addr %s129, 8
        %s131 = scalar_lea.vmem [#allocation2], %s130
        // Predicated region
        $region25: #{tpu_custom_call.1} parent=23 // pred_check
          %p132 = pneg %p55
        $region26: #{tpu_custom_call.1} parent=23 // pred_check_branch
          %134 = sbr.rel (%p132) target = $region28
        $region27: #{tpu_custom_call.1} parent=23 // pred_region
          %135 = dma.done %s128, 128
        $region28: #{tpu_custom_call.1} parent=23 // pred_fallthru
          _
        %s136 = sand.u32 %s42, 1
        %s137 = scalar_lea.sflag [#allocation3], %s136
        %s138 = sand.u32 %s42, 1
        %s139 = smul.addr %s138, 8
        %s140 = scalar_lea.vmem [#allocation2], %s139
        %p141 = pneg %p55
        %p142 = pneg %p52
        %p143 = pneg %p81
        %p144 = pneg %p78
        %s145 = sand.u32 %s68, 1
        %s146 = scalar_lea.sflag [#allocation4], %s145
        %s147 = sand.u32 %s68, 1
        %s148 = smul.addr %s147, 16
        %s149 = scalar_lea.vmem [#allocation5], %s148
        %s150 = smul.u32 %s22, 2
        %s151 = sadd.s32 %s150, %s23
        %p152 = scmp.eq.s32.totalorder %s23, 0
        // Predicated region
        $region29: #{tpu_custom_call.1} parent=23 // pred_check
          %p153 = pneg %p152
        $region30: #{tpu_custom_call.1} parent=23 // pred_check_branch
          %155 = sbr.rel (%p153) target = $region32
        $region31: #{tpu_custom_call.1} parent=23 // pred_region
          %156 = vst [vmem:[%s149] sm:$0xff] 0.0
          %157 = vst [vmem:[%s149 + $0x8] sm:$0xff] 0.0
        $region32: #{tpu_custom_call.1} parent=23 // pred_fallthru
          _
        %v158 = vld [vmem:[%s131] sm:$0xff]
        %v159 = vunpack.c.0.s8 %v158
        %v160 = vunpack.c.1.s8 %v158
        %v161 = vunpack.c.2.s8 %v158
        %v162 = vunpack.c.3.s8 %v158
        %v163 = vcvt.s32.f32 %v159
        %v164 = vcvt.s32.f32 %v160
        %v165 = vcvt.s32.f32 %v161
        %v166 = vcvt.s32.f32 %v162
        %v167 = vadd.f32 %v163, %v164
        %v168 = vadd.f32 %v167, %v165
        %v169 = vadd.f32 %v168, %v166
        %v170 = vadd.f32 %v169, 0.0
        %v171 = vmul.f32 %v163, %v163
        %v172 = vmul.f32 %v164, %v164
        %v173 = vmul.f32 %v165, %v165
        %v174 = vmul.f32 %v166, %v166
        %v175 = vadd.f32 %v171, %v172
        %v176 = vadd.f32 %v175, %v173
        %v177 = vadd.f32 %v176, %v174
        %v178 = vadd.f32 %v177, 0.0
        %v179 = vld [vmem:[%s149] sm:$0xff]
        %v180 = vadd.f32 %v179, %v170
        %181 = vst [vmem:[%s149] sm:$0xff] %v180
        %s182 = scalar_lea.vmem %s149, 8 [#allocation5]
        %v183 = vld [vmem:[%s182] sm:$0xff]
        %v184 = vadd.f32 %v183, %v178
        %185 = vst [vmem:[%s182] sm:$0xff] %v184
        %s186 = sand.u32 %s68, 1
        %s187 = scalar_lea.sflag [#allocation4], %s186
        %s188 = sand.u32 %s68, 1
        %s189 = smul.addr %s188, 16
        %s190 = scalar_lea.vmem [#allocation5], %s189
        // Predicated region
        $region33: #{tpu_custom_call.1} parent=23 // pred_check
          %p191 = pneg %p78
        $region34: #{tpu_custom_call.1} parent=23 // pred_check_branch
          %193 = sbr.rel (%p191) target = $region36
        $region35: #{tpu_custom_call.1} parent=23 // pred_region
          %s195 = ssub.s32 256, 256
          %196 = vsyncadd %s187, %s195
          %s197 = smul.addr %s22, 2
          %s198 = smul.addr %s197, 128
          %s199 = scalar_lea.hbm %s1, %s198
          %s200 = sshll.u32 %s190, 4
          %s201 = int_to_ptr.vmem [resolvable:$true] %s200
          %206 = dma.vmem_to_hbm [thread:$0]  %s201, 256, %s199, %s187, 128, 128, 8
        $region36: #{tpu_custom_call.1} parent=23 // pred_fallthru
          _
      $region24: #{tpu_custom_call.1} parent=5 // pred_fallthru
        _
      %p207 = scmp.le.s32.totalorder 2, %s13
      // Predicated region
      $region37: #{tpu_custom_call.1} parent=5 // pred_check
        %p208 = pneg %p207
      $region38: #{tpu_custom_call.1} parent=5 // pred_check_branch
        %210 = sbr.rel (%p208) target = $region40
      $region39: #{tpu_custom_call.1} parent=5 // pred_region
        %s211 = ssub.s32 %s13, 2
        // Predicated region
        $region41: #{tpu_custom_call.1} parent=39 // pred_check
          %p212 = pneg %p84
        $region42: #{tpu_custom_call.1} parent=39 // pred_check_branch
          %214 = sbr.rel (%p212) target = $region44
        $region43: #{tpu_custom_call.1} parent=39 // pred_region
          %s215 = sand.u32 %s69, 1
          %s216 = scalar_lea.sflag [#allocation4], %s215
          %s217 = sand.u32 %s69, 1
          %s218 = smul.addr %s217, 16
          %s219 = scalar_lea.vmem [#allocation5], %s218
          %220 = dma.done %s216, 256
        $region44: #{tpu_custom_call.1} parent=39 // pred_fallthru
          _
      $region40: #{tpu_custom_call.1} parent=5 // pred_fallthru
        _
    $region6: #{tpu_custom_call.1} parent=1 // loop_footer
      %s17 = sadd.s32 1, %s13
    $region7: #{tpu_custom_call.1} parent=1 // loop_footer_branch
      %12 = sbr.rel target = $region3
    $region8: #{tpu_custom_call.1} parent=1 // loop_exit
      _
    %221 = vsyncpa [#allocation3], 1
    %s222 = scalar_lea.sflag [#allocation3], 1
    %223 = vsyncpa %s222, 1
    %224 = vsyncpa [#allocation4], 1
    %s225 = scalar_lea.sflag [#allocation4], 1
    %226 = vsyncpa %s225, 1

</llo_original>
